<compile_context>
chip_gen: v7x
topology: tpu7x:2x2x1
jax: 0.10.0
libtpu: 0.0.40
codegen_flags: <defaults>
</compile_context>

<pallas_src>
import functools
import math

import jax
import jax.numpy as jnp
from jax.experimental import pallas as pl
from jax.experimental.pallas import tpu as pltpu


# ---------------------------------------------------------------------------
# helpers
# ---------------------------------------------------------------------------
def _row_tile(total_rows, block_rows):
    """Largest row tile that divides `total_rows` exactly (no padding / slicing copies)."""
    if total_rows <= block_rows:
        return total_rows
    cap = (min(block_rows, total_rows) // 8) * 8
    for tr in range(cap, 0, -8):
        if total_rows % tr == 0:
            return tr
    return total_rows  # fallback: single tile (rows not a multiple of 8)


def _heads_per_step(num_heads, head_dim, hidden):
    """Heads packed per attention grid step.

    The q/k/v/ctx block width (g*head_dim) must be a multiple of 128 lanes (or
    the full hidden dim); among valid group sizes prefer the largest one that
    keeps the block <= 256 lanes (fills the 128-wide v5e / 256-wide v6e-v7x MXU
    and keeps the per-step SxS score scratch modest).
    """
    del hidden
    valid = [g for g in range(1, num_heads + 1)
             if num_heads % g == 0 and (g == num_heads or (g * head_dim) % 128 == 0)]
    small = [g for g in valid if g * head_dim <= 256]
    return max(small) if small else min(valid)


# ---------------------------------------------------------------------------
# Kernel 1: fused Q/K/V projection (row-tiled; fused [H, 3H] weight VMEM-resident)
# ---------------------------------------------------------------------------
def _qkv_kernel(x_ref, w_ref, b_ref, q_ref, k_ref, v_ref, *, hidden):
    # Single NN matmul against the pre-transposed [in, 3*out] weight: no per-step
    # XLU transpose of the PyTorch [out, in] layout, one weight stream, f32 acc.
    y = jax.lax.dot_general(
        x_ref[...], w_ref[...],
        dimension_numbers=(((1,), (0,)), ((), ())),
        preferred_element_type=jnp.float32)
    y = y + b_ref[...].astype(jnp.float32)
    q_ref[...] = y[:, :hidden].astype(q_ref.dtype)
    k_ref[...] = y[:, hidden:2 * hidden].astype(k_ref.dtype)
    v_ref[...] = y[:, 2 * hidden:].astype(v_ref.dtype)


# ---------------------------------------------------------------------------
# Kernel 2: scaled-dot-product attention, one (batch, head-group) per grid step
# ---------------------------------------------------------------------------
def _attn_kernel(q_ref, k_ref, v_ref, m_ref, o_ref, *, head_dim, heads_per_step):
    m = m_ref[0, 0].astype(jnp.float32)          # additive mask [1, S] -> broadcasts over rows

    for g in range(heads_per_step):              # static unroll over the packed heads
        lo = g * head_dim
        hi = lo + head_dim
        q = q_ref[0, :, lo:hi]                   # [S, dh] native dtype (Q pre-scaled by 1/sqrt(dh))
        k = k_ref[0, :, lo:hi]                   # [S, dh]
        v = v_ref[0, :, lo:hi]                   # [S, dh]

        # scores = q @ k^T + mask   (MXU, f32 accumulation regardless of input dtype)
        s = jax.lax.dot_general(
            q, k, dimension_numbers=(((1,), (1,)), ((), ())),
            preferred_element_type=jnp.float32)
        s = s + m

        # numerically stable softmax with deferred normalization
        s = s - jnp.max(s, axis=-1, keepdims=True)
        e = jnp.exp(s)
        denom = jnp.sum(e, axis=-1, keepdims=True)

        # PV matmul on un-normalized probs, then a cheap [S,1] reciprocal scale
        # (avoids SxS VPU divides; reciprocal is negligible either way).
        ctx = jax.lax.dot_general(
            e.astype(v.dtype), v, dimension_numbers=(((1,), (0,)), ((), ())),
            preferred_element_type=jnp.float32)
        ctx = ctx * pl.reciprocal(denom, approx=False)

        # TODO(synk): attention-prob dropout omitted (identity in eval mode).
        o_ref[0, :, lo:hi] = ctx.astype(o_ref.dtype)


# ---------------------------------------------------------------------------
# Kernel 3: BertSelfOutput — dense + bias + residual + LayerNorm (row-tiled)
# ---------------------------------------------------------------------------
def _self_output_kernel(h_ref, res_ref, w_ref, b_ref, g_ref, beta_ref, o_ref):
    # dense: ctx @ Wo (Wo pre-transposed to [in, out] on the host -> pure NN matmul)
    y = jax.lax.dot_general(
        h_ref[...], w_ref[...],
        dimension_numbers=(((1,), (0,)), ((), ())),
        preferred_element_type=jnp.float32)
    # TODO(synk): hidden dropout omitted (identity in eval mode).
    y = y + b_ref[...].astype(jnp.float32) + res_ref[...].astype(jnp.float32)

    # TF-style LayerNorm (eps inside the sqrt); two-pass variance E[(x-mean)^2]
    # to match the reference exactly, normalization via rsqrt (EUP).
    mean = jnp.mean(y, axis=-1, keepdims=True)
    yc = y - mean
    var = jnp.mean(yc * yc, axis=-1, keepdims=True)
    inv = jax.lax.rsqrt(var + 1e-12)
    o_ref[...] = (g_ref[...].astype(jnp.float32) * (yc * inv)
                  + beta_ref[...].astype(jnp.float32)).astype(o_ref.dtype)


# ---------------------------------------------------------------------------
# Wrapper: full BertAttention forward
# ---------------------------------------------------------------------------
def bert_attention(hidden_states, attention_mask, params, num_heads, block_rows=512):
    """hidden_states: [B, S, H]; attention_mask: [B, 1, 1, S] additive mask.

    params: dict with wq/wk/wv/wo [H, H] (PyTorch Linear [out, in] layout),
            bq/bk/bv/bo [H], gamma/beta [H].
    """
    B, S, H = hidden_states.shape
    assert H % num_heads == 0
    dh = H // num_heads
    R = B * S
    dtype = hidden_states.dtype
    itemsize = jnp.dtype(dtype).itemsize
    scale = 1.0 / math.sqrt(dh)

    # ---- host-side (one-time) weight packing --------------------------------
    # Fused, pre-transposed [in, 3*out] QKV weight; 1/sqrt(dh) folded into the Q
    # projection so the SxS score matrix is never scaled inside the hot loop.
    wqkv = jnp.concatenate(
        [(params["wq"] * scale).T, params["wk"].T, params["wv"].T], axis=1).astype(dtype)
    bqkv = jnp.concatenate(
        [params["bq"] * scale, params["bk"], params["bv"]]).reshape(1, 3 * H).astype(dtype)
    wo_t = params["wo"].T.astype(dtype)                    # [in, out]
    bo = params["bo"].reshape(1, H).astype(dtype)
    gamma = params["gamma"].reshape(1, H)
    beta = params["beta"].reshape(1, H)

    tr = _row_tile(R, block_rows)
    n_rt = R // tr
    x2 = hidden_states.reshape(R, H)                       # free reshape; also LN residual

    row_spec = pl.BlockSpec((tr, H), lambda i: (i, 0))
    # Constant block index -> Pallas keeps the weight blocks VMEM-resident across steps.
    # TODO(synk): single-buffer these (pipeline_mode=pl.Buffered(1)) to halve resident
    # weight VMEM on v7x once that path is universally available.
    wqkv_spec = pl.BlockSpec((H, 3 * H), lambda i: (0, 0))
    bqkv_spec = pl.BlockSpec((1, 3 * H), lambda i: (0, 0))
    w_spec = pl.BlockSpec((H, H), lambda i: (0, 0))
    vec_spec = pl.BlockSpec((1, H), lambda i: (0, 0))

    # 40 MiB is safe on every generation (v7x TC has 64 MiB physical VMEM);
    # on v5e/v6e (128 MiB) block_rows and this limit can both be raised.
    vmem_limit = 40 * 1024 * 1024

    # ---- 1) fused QKV projection --------------------------------------------
    q2, k2, v2 = pl.pallas_call(
        functools.partial(_qkv_kernel, hidden=H),
        out_shape=(jax.ShapeDtypeStruct((R, H), dtype),
                   jax.ShapeDtypeStruct((R, H), dtype),
                   jax.ShapeDtypeStruct((R, H), dtype)),
        grid_spec=pltpu.PrefetchScalarGridSpec(
            num_scalar_prefetch=0,
            grid=(n_rt,),
            in_specs=[row_spec, wqkv_spec, bqkv_spec],
            out_specs=(row_spec, row_spec, row_spec),
        ),
        compiler_params=pltpu.CompilerParams(
            dimension_semantics=("parallel",),
            vmem_limit_bytes=vmem_limit),
        cost_estimate=pl.CostEstimate(
            flops=6 * R * H * H,
            transcendentals=0,
            bytes_accessed=(4 * R * H + 3 * H * H) * itemsize),
    )(x2, wqkv, bqkv)

    # ---- 2) attention: grid over (batch, head-group), no split_heads copies --
    G = _heads_per_step(num_heads, dh, H)
    n_hg = num_heads // G
    q3 = q2.reshape(B, S, H)                               # free reshapes
    k3 = k2.reshape(B, S, H)
    v3 = v2.reshape(B, S, H)

    head_spec = pl.BlockSpec((1, S, G * dh), lambda b, g: (b, 0, g))
    mask_spec = pl.BlockSpec((1, 1, 1, S), lambda b, g: (b, 0, 0, 0))

    # TODO(synk): for long sequences (S >~ 2k, especially on v7x's 64 MiB VMEM) switch
    # to a flash-style KV-tiled kernel instead of materializing the SxS score block.
    ctx = pl.pallas_call(
        functools.partial(_attn_kernel, head_dim=dh, heads_per_step=G),
        out_shape=jax.ShapeDtypeStruct((B, S, H), dtype),
        grid_spec=pltpu.PrefetchScalarGridSpec(
            num_scalar_prefetch=0,
            grid=(B, n_hg),
            in_specs=[head_spec, head_spec, head_spec, mask_spec],
            out_specs=head_spec,
        ),
        compiler_params=pltpu.CompilerParams(
            dimension_semantics=("parallel", "parallel")),
        cost_estimate=pl.CostEstimate(
            flops=4 * B * num_heads * S * S * dh,
            transcendentals=B * num_heads * S * (S + 1),
            bytes_accessed=(4 * B * S * H + B * S) * itemsize),
    )(q3, k3, v3, attention_mask)

    # ---- 3) self-output: dense + residual + LayerNorm ------------------------
    ctx2 = ctx.reshape(R, H)                               # free reshape, already fused layout

    out2 = pl.pallas_call(
        _self_output_kernel,
        out_shape=jax.ShapeDtypeStruct((R, H), dtype),
        grid_spec=pltpu.PrefetchScalarGridSpec(
            num_scalar_prefetch=0,
            grid=(n_rt,),
            in_specs=[row_spec, row_spec, w_spec, vec_spec, vec_spec, vec_spec],
            out_specs=row_spec,
        ),
        compiler_params=pltpu.CompilerParams(
            dimension_semantics=("parallel",),
            vmem_limit_bytes=vmem_limit),
        cost_estimate=pl.CostEstimate(
            flops=2 * R * H * H,
            transcendentals=R,
            bytes_accessed=(3 * R * H + H * H) * itemsize),
    )(ctx2, x2, wo_t, bo, gamma, beta)

    return out2.reshape(B, S, H)


# ---------------------------------------------------------------------------
# Pure-JAX reference (mirrors the PyTorch forward)
# ---------------------------------------------------------------------------
def _reference(hidden_states, attention_mask, p, num_heads):
    B, S, H = hidden_states.shape
    dh = H // num_heads

    def lin(x, w, b):
        return jnp.einsum("bsh,oh->bso", x, w) + b

    def heads(x):
        return x.reshape(B, S, num_heads, dh).transpose(0, 2, 1, 3)

    q = heads(lin(hidden_states, p["wq"], p["bq"]))
    k = heads(lin(hidden_states, p["wk"], p["bk"]))
    v = heads(lin(hidden_states, p["wv"], p["bv"]))

    scores = jnp.einsum("bhqd,bhkd->bhqk", q, k) / math.sqrt(dh)
    scores = scores + attention_mask
    probs = jax.nn.softmax(scores, axis=-1)
    ctx = jnp.einsum("bhqk,bhkd->bhqd", probs, v)
    ctx = ctx.transpose(0, 2, 1, 3).reshape(B, S, H)

    y = lin(ctx, p["wo"], p["bo"]) + hidden_states
    u = jnp.mean(y, axis=-1, keepdims=True)
    s = jnp.mean((y - u) ** 2, axis=-1, keepdims=True)
    y = (y - u) / jnp.sqrt(s + 1e-12)
    return p["gamma"] * y + p["beta"]


if __name__ == "__main__":
    key = jax.random.PRNGKey(0)

    def run_case(B, S, H, nh, block_rows):
        ks = jax.random.split(jax.random.fold_in(key, B * 100000 + S * 1000 + H), 12)
        hidden = jax.random.normal(ks[0], (B, S, H), dtype=jnp.float32)
        # extended additive attention mask [B, 1, 1, S]; mask out the last 2 keys of the last batch
        valid = jnp.ones((B, S), dtype=jnp.float32).at[-1, S - 2:].set(0.0)
        mask = ((1.0 - valid) * -10000.0).reshape(B, 1, 1, S)

        params = dict(
            wq=jax.random.normal(ks[1], (H, H), dtype=jnp.float32) * 0.02,
            bq=jax.random.normal(ks[2], (H,), dtype=jnp.float32) * 0.02,
            wk=jax.random.normal(ks[3], (H, H), dtype=jnp.float32) * 0.02,
            bk=jax.random.normal(ks[4], (H,), dtype=jnp.float32) * 0.02,
            wv=jax.random.normal(ks[5], (H, H), dtype=jnp.float32) * 0.02,
            bv=jax.random.normal(ks[6], (H,), dtype=jnp.float32) * 0.02,
            wo=jax.random.normal(ks[7], (H, H), dtype=jnp.float32) * 0.02,
            bo=jax.random.normal(ks[8], (H,), dtype=jnp.float32) * 0.02,
            gamma=1.0 + 0.1 * jax.random.normal(ks[9], (H,), dtype=jnp.float32),
            beta=0.1 * jax.random.normal(ks[10], (H,), dtype=jnp.float32),
        )

        out = bert_attention(hidden, mask, params, nh, block_rows=block_rows)
        out = jax.block_until_ready(out)
        ref = _reference(hidden, mask, params, nh)
        assert out.shape == (B, S, H)
        err = float(jnp.max(jnp.abs(out - ref)))
        assert jnp.allclose(out, ref, atol=5e-3, rtol=5e-3), f"mismatch vs reference (max abs err={err})"

    # Small spec-sized shape (batch=2, seq=8, hidden=32, 4 heads): head group = full H.
    run_case(B=2, S=8, H=32, nh=4, block_rows=512)
    # Larger lane-dense shape: (8,128) tiling, multi-step row grid, resident fused weights,
    # 4 heads x dh=64 packed into one 256-lane attention block per grid step.
    run_case(B=2, S=128, H=256, nh=4, block_rows=64)

    print("KERNEL_OK")
</pallas_src>

<mosaic_0001>
module attributes {stable_mosaic.version = 11 : i64} {
  func.func @_qkv_kernel(%arg0: i32, %arg1: memref<16x32xf32, #tpu.memory_space<vmem>>, %arg2: memref<32x96xf32, #tpu.memory_space<vmem>>, %arg3: memref<1x96xf32, #tpu.memory_space<vmem>>, %arg4: memref<16x32xf32, #tpu.memory_space<vmem>>, %arg5: memref<16x32xf32, #tpu.memory_space<vmem>>, %arg6: memref<16x32xf32, #tpu.memory_space<vmem>>) attributes {dimension_semantics = [#tpu.dimension_semantics<parallel>], iteration_bounds = array<i64: 1>, scalar_prefetch = 0 : i64, scratch_operands = 0 : i64, tpu.core_type = #tpu.core_type<tc>, window_params = [{transform_indices = @transform_0, window_bounds = array<i64: 16, 32>}, {pipeline_mode = #tpu.pipeline_mode<synchronous>, transform_indices = @transform_1, window_bounds = array<i64: 32, 96>}, {pipeline_mode = #tpu.pipeline_mode<synchronous>, transform_indices = @transform_2, window_bounds = array<i64: 1, 96>}, {transform_indices = @transform_3, window_bounds = array<i64: 16, 32>}, {transform_indices = @transform_4, window_bounds = array<i64: 16, 32>}, {transform_indices = @transform_5, window_bounds = array<i64: 16, 32>}]} {
    %c0 = arith.constant 0 : index
    %c0_0 = arith.constant 0 : index
    %0 = vector.load %arg1[%c0, %c0_0] : memref<16x32xf32, #tpu.memory_space<vmem>>, vector<16x32xf32>
    %c0_1 = arith.constant 0 : index
    %c0_2 = arith.constant 0 : index
    %1 = vector.load %arg2[%c0_1, %c0_2] : memref<32x96xf32, #tpu.memory_space<vmem>>, vector<32x96xf32>
    %cst = arith.constant dense<0.000000e+00> : vector<16x96xf32>
    %2 = tpu.matmul %0, %1, %cst {dimension_numbers = #tpu.dot_dimension_numbers<[1], [0], [0], [1], [0, 0, 1, 1], [], []>} : vector<16x32xf32>, vector<32x96xf32>, vector<16x96xf32> -> vector<16x96xf32>
    %c0_3 = arith.constant 0 : index
    %c0_4 = arith.constant 0 : index
    %3 = vector.load %arg3[%c0_3, %c0_4] : memref<1x96xf32, #tpu.memory_space<vmem>>, vector<1x96xf32>
    %4 = vector.broadcast %3 : vector<1x96xf32> to vector<16x96xf32>
    %5 = arith.addf %2, %4 : vector<16x96xf32>
    %6 = vector.extract_strided_slice %5 {offsets = [0, 0], sizes = [16, 32], strides = [1, 1]} : vector<16x96xf32> to vector<16x32xf32>
    %c0_5 = arith.constant 0 : index
    %c0_6 = arith.constant 0 : index
    %7 = vector.load %arg4[%c0_5, %c0_6] : memref<16x32xf32, #tpu.memory_space<vmem>>, vector<16x32xf32>
    tpu.vector_store %arg4[%c0_5, %c0_6], %6 {strides = array<i32>} : memref<16x32xf32, #tpu.memory_space<vmem>>, vector<16x32xf32>,
    %8 = vector.extract_strided_slice %5 {offsets = [0, 32], sizes = [16, 32], strides = [1, 1]} : vector<16x96xf32> to vector<16x32xf32>
    %c0_7 = arith.constant 0 : index
    %c0_8 = arith.constant 0 : index
    %9 = vector.load %arg5[%c0_7, %c0_8] : memref<16x32xf32, #tpu.memory_space<vmem>>, vector<16x32xf32>
    tpu.vector_store %arg5[%c0_7, %c0_8], %8 {strides = array<i32>} : memref<16x32xf32, #tpu.memory_space<vmem>>, vector<16x32xf32>,
    %10 = vector.extract_strided_slice %5 {offsets = [0, 64], sizes = [16, 32], strides = [1, 1]} : vector<16x96xf32> to vector<16x32xf32>
    %c0_9 = arith.constant 0 : index
    %c0_10 = arith.constant 0 : index
    %11 = vector.load %arg6[%c0_9, %c0_10] : memref<16x32xf32, #tpu.memory_space<vmem>>, vector<16x32xf32>
    tpu.vector_store %arg6[%c0_9, %c0_10], %10 {strides = array<i32>} : memref<16x32xf32, #tpu.memory_space<vmem>>, vector<16x32xf32>,
    return
  }
  func.func @transform_0(%arg0: i32) -> (i32, i32) {
    %c0_i32 = arith.constant 0 : i32
    %c0_i32_0 = arith.constant 0 : i32
    return %arg0, %c0_i32 : i32, i32
  }
  func.func @transform_1(%arg0: i32) -> (i32, i32) {
    %c0_i32 = arith.constant 0 : i32
    %c0_i32_0 = arith.constant 0 : i32
    %c0_i32_1 = arith.constant 0 : i32
    return %c0_i32, %c0_i32_0 : i32, i32
  }
  func.func @transform_2(%arg0: i32) -> (i32, i32) {
    %c0_i32 = arith.constant 0 : i32
    %c0_i32_0 = arith.constant 0 : i32
    %c0_i32_1 = arith.constant 0 : i32
    return %c0_i32, %c0_i32_0 : i32, i32
  }
  func.func @transform_3(%arg0: i32) -> (i32, i32) {
    %c0_i32 = arith.constant 0 : i32
    %c0_i32_0 = arith.constant 0 : i32
    return %arg0, %c0_i32 : i32, i32
  }
  func.func @transform_4(%arg0: i32) -> (i32, i32) {
    %c0_i32 = arith.constant 0 : i32
    %c0_i32_0 = arith.constant 0 : i32
    return %arg0, %c0_i32 : i32, i32
  }
  func.func @transform_5(%arg0: i32) -> (i32, i32) {
    %c0_i32 = arith.constant 0 : i32
    %c0_i32_0 = arith.constant 0 : i32
    return %arg0, %c0_i32 : i32, i32
  }
}

</mosaic_0001>

<llo_original>
// kernel: tpu_custom_call.1
$region0: #{tpu_custom_call.1}
  #allocation0 [shape = 'u32[]', space=smem, size = 0x4, offset = 0x4, fixed_abs, tag = 'smem constant byte address 0x4 - core index']
  #allocation1 [shape = 'u32[144,128]{1,0:T(1,128)}', space=vmem, size = 0x12000, scoped, tag = 'internal scratch']
  %s0 = inlined_call_operand.hbm [shape: f32[16,32], index: 0, kind: input, shape index: {}]
  %s1 = inlined_call_operand.hbm [shape: f32[32,96], index: 1, kind: input, shape index: {}]
  %s2 = inlined_call_operand.vmem [shape: f32[1,96], index: 2, kind: input, shape index: {}]
  %s3 = inlined_call_operand.hbm [shape: f32[16,32], index: 3, kind: output, shape index: {0}]
  %s4 = inlined_call_operand.hbm [shape: f32[16,32], index: 4, kind: output, shape index: {1}]
  %s5 = inlined_call_operand.hbm [shape: f32[16,32], index: 5, kind: output, shape index: {2}]
  %6 = xla_tuple %s3, %s4, %s5
  %s7 = sld [smem:[#allocation0]]
  $region46: #{tpu_custom_call.1} parent=0
    _
  %s9 = ssub.s32 1, %s7
  %s10 = scalar_select 0, %s9, %s7
  $region1: #{tpu_custom_call.1} parent=0
    #allocation2 [shape = 'u8[8192]{0}', space=vmem, size = 0x2000, scoped, tag = 'input window, operand 0, single buffered']
    #allocation3 [shape = 's32[1]{0}', space=sflag, size = 0x4, scoped, tag = 'scoped memory for tpu_custom_call.1']
    #allocation4 [shape = 's32[1]{0}', space=sflag, size = 0x4, scoped, tag = 'scoped memory for tpu_custom_call.1']
    #allocation5 [shape = 'u8[16384]{0}', space=vmem, size = 0x4000, scoped, tag = 'input window, operand 1, single buffered']
    #allocation6 [shape = 's32[1]{0}', space=sflag, size = 0x4, scoped, tag = 'scoped memory for tpu_custom_call.1']
    #allocation7 [shape = 'u8[8192]{0}', space=vmem, size = 0x2000, scoped, tag = 'output window, operand 0, single buffered']
    #allocation8 [shape = 'u8[8192]{0}', space=vmem, size = 0x2000, scoped, tag = 'output window, operand 1, single buffered']
    #allocation9 [shape = 's32[1]{0}', space=sflag, size = 0x4, scoped, tag = 'scoped memory for tpu_custom_call.1']
    #allocation10 [shape = 'u8[8192]{0}', space=vmem, size = 0x2000, scoped, tag = 'output window, operand 2, single buffered']
    %11 = vsyncpa [#allocation3], 0
    %12 = vsyncpa [#allocation6], 0
    %13 = vsyncpa [#allocation4], 0
    %14 = vsyncpa [#allocation9], 0
    // Predicated region
    $region2: #{tpu_custom_call.1} parent=1 // pred_check
      _
    $region3: #{tpu_custom_call.1} parent=1 // pred_check_branch
      %16 = sbr.rel (0) target = $region5
    $region4: #{tpu_custom_call.1} parent=1 // pred_region
      %s18 = ssub.s32 256, 256
      %19 = vsyncadd [#allocation3], %s18
      %s20 = sshll.u32 [#allocation2], 4
      %s21 = int_to_ptr.vmem [resolvable:$true] %s20
      %26 = dma.hbm_to_vmem [thread:$0]  %s0, 256, %s21, [#allocation3], 128, 128, 8
    $region5: #{tpu_custom_call.1} parent=1 // pred_fallthru
      _
    // Predicated region
    $region6: #{tpu_custom_call.1} parent=1 // pred_check
      _
    $region7: #{tpu_custom_call.1} parent=1 // pred_check_branch
      %28 = sbr.rel (0) target = $region9
    $region8: #{tpu_custom_call.1} parent=1 // pred_region
      %s30 = ssub.s32 512, 512
      %31 = vsyncadd [#allocation6], %s30
      %s32 = sshll.u32 [#allocation5], 4
      %s33 = int_to_ptr.vmem [resolvable:$true] %s32
      %38 = dma.hbm_to_vmem [thread:$0]  %s1, 512, %s33, [#allocation6], 128, 128, 8
    $region9: #{tpu_custom_call.1} parent=1 // pred_fallthru
      _
    // Predicated region
    $region10: #{tpu_custom_call.1} parent=1 // pred_check
      _
    $region11: #{tpu_custom_call.1} parent=1 // pred_check_branch
      %40 = sbr.rel (0) target = $region13
    $region12: #{tpu_custom_call.1} parent=1 // pred_region
      _
    $region13: #{tpu_custom_call.1} parent=1 // pred_fallthru
      _
    // Predicated region
    $region14: #{tpu_custom_call.1} parent=1 // pred_check
      _
    $region15: #{tpu_custom_call.1} parent=1 // pred_check_branch
      %42 = sbr.rel (0) target = $region17
    $region16: #{tpu_custom_call.1} parent=1 // pred_region
      %43 = dma.done [#allocation3], 256
    $region17: #{tpu_custom_call.1} parent=1 // pred_fallthru
      _
    // Predicated region
    $region18: #{tpu_custom_call.1} parent=1 // pred_check
      _
    $region19: #{tpu_custom_call.1} parent=1 // pred_check_branch
      %45 = sbr.rel (0) target = $region21
    $region20: #{tpu_custom_call.1} parent=1 // pred_region
      %46 = dma.done [#allocation6], 512
    $region21: #{tpu_custom_call.1} parent=1 // pred_fallthru
      _
    %v47 = vld [vmem:[#allocation2] sm:$0xff]
    %v48 = vld [vmem:[#allocation2 + $0x8] sm:$0xff]
    %v49 = vld [vmem:[#allocation5] sm:$0xff]
    %v50 = vld [vmem:[#allocation5 + $0x8] sm:$0xff]
    %v51 = vld [vmem:[#allocation5 + $0x10] sm:$0xff]
    %v52 = vld [vmem:[#allocation5 + $0x18] sm:$0xff]
    %v53 = vld [vmem:[%s2] sm:$0x1]
    %v55 = vlaneseq
    %v56 = vshrl.u32 %v55, 7
    %v57 = vsub.s32 0, %v56
    %v58 = vrot.slane %v53, %v57
    %vm60 = vcmask 261120
    %v62 = vsel %vm60, %v47, 0
    %v65 = vsel %vm60, %v48, 0
    %67 = vmatprep.subr.mxu0 0.0
    %68 = vmatpush1.msra.mxu0 %v49
    %69 = vmatprep.subr.mxu0 0.0
    %70 = vmatpush1.msra.mxu0 %v50
    %71 = vmatprep.subr.mxu0 0.0
    %72 = vmatpush1.msra.mxu0 %v51
    %73 = vmatprep.subr.mxu0 0.0
    %74 = vmatpush1.msra.mxu0 %v52
    %75 = vmatprep.subr.mxu0 0.0
    %76 = vmatpush1.msra.mxu0 0.0
    %77 = vmatprep.subr.mxu0 0.0
    %78 = vmatpush1.msra.mxu0 0.0
    %79 = vmatprep.subr.mxu0 0.0
    %80 = vmatpush1.msra.mxu0 0.0
    %81 = vmatprep.subr.mxu0 0.0
    %82 = vmatpush1.msra.mxu0 0.0
    %83 = vmatprep.subr.mxu0 0.0
    %84 = vmatpush1.msra.mxu0 0.0
    %85 = vmatprep.subr.mxu0 0.0
    %86 = vmatpush1.msra.mxu0 0.0
    %87 = vmatprep.subr.mxu0 0.0
    %88 = vmatpush1.msra.mxu0 0.0
    %89 = vmatprep.subr.mxu0 0.0
    %90 = vmatpush1.msra.mxu0 0.0
    %91 = vmatprep.subr.mxu0 0.0
    %92 = vmatpush1.msra.mxu0 0.0
    %93 = vmatprep.subr.mxu0 0.0
    %94 = vmatpush1.msra.mxu0 0.0
    %95 = vmatprep.subr.mxu0 0.0
    %96 = vmatpush1.msra.mxu0 0.0
    %97 = vmatprep.subr.mxu0 0.0
    %98 = vmatpush1.msra.mxu0 0.0
    %99 = vmatprep.subr.mxu0 0.0
    %100 = vmatpush1.msra.mxu0 0.0
    %101 = vmatprep.subr.mxu0 0.0
    %102 = vmatpush1.msra.mxu0 0.0
    %103 = vmatprep.subr.mxu0 0.0
    %104 = vmatpush1.msra.mxu0 0.0
    %105 = vmatprep.subr.mxu0 0.0
    %106 = vmatpush1.msra.mxu0 0.0
    %107 = vmatprep.subr.mxu0 0.0
    %108 = vmatpush1.msra.mxu0 0.0
    %109 = vmatprep.subr.mxu0 0.0
    %110 = vmatpush1.msra.mxu0 0.0
    %111 = vmatprep.subr.mxu0 0.0
    %112 = vmatpush1.msra.mxu0 0.0
    %113 = vmatprep.subr.mxu0 0.0
    %114 = vmatpush1.msra.mxu0 0.0
    %115 = vmatprep.subr.mxu0 0.0
    %116 = vmatpush1.msra.mxu0 0.0
    %117 = vmatprep.subr.mxu0 0.0
    %118 = vmatpush1.msra.mxu0 0.0
    %119 = vmatprep.subr.mxu0 0.0
    %120 = vmatpush1.msra.mxu0 0.0
    %121 = vmatprep.subr.mxu0 0.0
    %122 = vmatpush1.msra.mxu0 0.0
    %123 = vmatprep.subr.mxu0 0.0
    %124 = vmatpush1.msra.mxu0 0.0
    %125 = vmatprep.subr.mxu0 0.0
    %126 = vmatpush1.msra.mxu0 0.0
    %127 = vmatprep.subr.mxu0 0.0
    %128 = vmatpush1.msra.mxu0 0.0
    %129 = vmatprep.subr.mxu0 0.0
    %130 = vmatpush1.msra.mxu0 0.0
    %131 = vmatprep.mubr.f32.mxu0 0.0
    %132 = vmatmul.mubr.f32.gmra.mrb[0].mxu0 %v62
    %v133 = vpop.f32.mrb[0].mxu0
    %v134 = vadd.f32 %v58, %v133
    %v135 = vpop.f32.mrb[0].mxu0
    %136 = vmatprep.mubr.f32.mxu0 0.0
    %137 = vmatmul.mubr.f32.gmra.mrb[0].mxu0 %v65
    %v138 = vpop.f32.mrb[0].mxu0
    %v139 = vadd.f32 %v58, %v138
    %v140 = vpop.f32.mrb[0].mxu0
    %141 = vdwg.mxu0
    %142 = vst.msk [vmem:[#allocation7] sm:$0xff] %vm60, %v134
    %143 = vst.msk [vmem:[#allocation7 + $0x8] sm:$0xff] %vm60, %v139
    %146 = vrot.lane.b32.xlu0 %v134, 96
    %v147 = vpop.permute.xlu0 %146
    %148 = vrot.lane.b32.xlu0 %v139, 96
    %v149 = vpop.permute.xlu0 %148
    %152 = vst.msk [vmem:[#allocation8] sm:$0xff] %vm60, %v147
    %153 = vst.msk [vmem:[#allocation8 + $0x8] sm:$0xff] %vm60, %v149
    %154 = vrot.lane.b32.xlu0 %v134, 64
    %v155 = vpop.permute.xlu0 %154
    %156 = vrot.lane.b32.xlu0 %v139, 64
    %v157 = vpop.permute.xlu0 %156
    %160 = vst.msk [vmem:[#allocation10] sm:$0xff] %vm60, %v155
    %161 = vst.msk [vmem:[#allocation10 + $0x8] sm:$0xff] %vm60, %v157
    // Predicated region
    $region22: #{tpu_custom_call.1} parent=1 // pred_check
      _
    $region23: #{tpu_custom_call.1} parent=1 // pred_check_branch
      %163 = sbr.rel (0) target = $region25
    $region24: #{tpu_custom_call.1} parent=1 // pred_region
      %s165 = ssub.s32 256, 256
      %166 = vsyncadd [#allocation4], %s165
      %s167 = sshll.u32 [#allocation7], 4
      %s168 = int_to_ptr.vmem [resolvable:$true] %s167
      %173 = dma.vmem_to_hbm [thread:$0]  %s168, 256, %s3, [#allocation4], 128, 128, 8
    $region25: #{tpu_custom_call.1} parent=1 // pred_fallthru
      _
    // Predicated region
    $region26: #{tpu_custom_call.1} parent=1 // pred_check
      _
    $region27: #{tpu_custom_call.1} parent=1 // pred_check_branch
      %175 = sbr.rel (0) target = $region29
    $region28: #{tpu_custom_call.1} parent=1 // pred_region
      %s177 = ssub.s32 256, 256
      %178 = vsyncadd [#allocation9], %s177
      %s179 = sshll.u32 [#allocation8], 4
      %s180 = int_to_ptr.vmem [resolvable:$true] %s179
      %185 = dma.vmem_to_hbm [thread:$0]  %s180, 256, %s4, [#allocation9], 128, 128, 8
    $region29: #{tpu_custom_call.1} parent=1 // pred_fallthru
      _
    // Predicated region
    $region30: #{tpu_custom_call.1} parent=1 // pred_check
      _
    $region31: #{tpu_custom_call.1} parent=1 // pred_check_branch
      %187 = sbr.rel (0) target = $region33
    $region32: #{tpu_custom_call.1} parent=1 // pred_region
      %s189 = ssub.s32 256, 256
      %190 = vsyncadd [#allocation9], %s189
      %s191 = sshll.u32 [#allocation10], 4
      %s192 = int_to_ptr.vmem [resolvable:$true] %s191
      %197 = dma.vmem_to_hbm [thread:$0]  %s192, 256, %s5, [#allocation9], 128, 128, 8
    $region33: #{tpu_custom_call.1} parent=1 // pred_fallthru
      _
    // Predicated region
    $region34: #{tpu_custom_call.1} parent=1 // pred_check
      _
    $region35: #{tpu_custom_call.1} parent=1 // pred_check_branch
      %199 = sbr.rel (0) target = $region37
    $region36: #{tpu_custom_call.1} parent=1 // pred_region
      %200 = dma.done [#allocation4], 256
    $region37: #{tpu_custom_call.1} parent=1 // pred_fallthru
      _
    // Predicated region
    $region38: #{tpu_custom_call.1} parent=1 // pred_check
      _
    $region39: #{tpu_custom_call.1} parent=1 // pred_check_branch
      %202 = sbr.rel (0) target = $region41
    $region40: #{tpu_custom_call.1} parent=1 // pred_region
      %203 = dma.done [#allocation9], 256
    $region41: #{tpu_custom_call.1} parent=1 // pred_fallthru
      _
    // Predicated region
    $region42: #{tpu_custom_call.1} parent=1 // pred_check
      _
    $region43: #{tpu_custom_call.1} parent=1 // pred_check_branch
      %205 = sbr.rel (0) target = $region45
    $region44: #{tpu_custom_call.1} parent=1 // pred_region
      %206 = dma.done [#allocation9], 256
    $region45: #{tpu_custom_call.1} parent=1 // pred_fallthru
      _
    %207 = vsyncpa [#allocation3], 1
    %208 = vsyncpa [#allocation6], 1
    %209 = vsyncpa [#allocation4], 1
    %210 = vsyncpa [#allocation9], 1

</llo_original>
